<compile_context>
chip_gen: v7x
topology: tpu7x:2x2x1
jax: 0.10.0
libtpu: 0.0.40
codegen_flags: <defaults>
</compile_context>

<pallas_src>
import functools

import jax
import jax.numpy as jnp
from jax.experimental import pallas as pl
from jax.experimental.pallas import tpu as pltpu

_LANE = 128
_ROW_ALIGN = 32          # int8 tile is (32,128); also a multiple of the f32 (8,128) tile
_MAX_BLOCK_ROWS = 512    # 512*128*4 B = 256 KiB per f32 block -> ~1.3 MiB pipeline buffers


def _depth_loss_kernel(pred_ref, gt_ref, mask_ref, out_ref, acc_ref, diff_ref, *,
                       n_rows, block_rows, n_blocks,
                       berhu_scaling, si_scaling, eps):
    i = pl.program_id(0)

    # ---- init accumulators on the first grid step ----
    @pl.when(i == 0)
    def _init():
        acc_ref[0] = 0.0   # max over valid px of |pred - gt|
        acc_ref[1] = 0.0   # count of mask-valid px
        acc_ref[2] = 0.0   # count of SI-valid px (mask & pred>eps & gt>eps)
        acc_ref[3] = 0.0   # sum of log(pred/gt) over SI-valid px
        acc_ref[4] = 0.0   # sum of log(pred/gt)^2 over SI-valid px

    pred = pred_ref[...]
    gt = gt_ref[...]

    # Boundary blocks may read garbage rows past the true slab -> iota row mask.
    row_ids = jax.lax.broadcasted_iota(jnp.int32, (block_rows, _LANE), 0)
    in_bounds = (i * block_rows + row_ids) < n_rows
    m = (mask_ref[...] != 0) & in_bounds

    # ---- BerHu, single HBM pass: stash masked |diff| (masked / OOB px -> 0) ----
    diff = jnp.where(m, jnp.abs(pred - gt), 0.0)
    row0 = pl.multiple_of(i * block_rows, block_rows)
    diff_ref[pl.ds(row0, block_rows), :] = diff
    acc_ref[0] = jnp.maximum(acc_ref[0], jnp.max(diff))
    acc_ref[1] = acc_ref[1] + jnp.sum(m.astype(jnp.float32))

    # ---- scale-invariant partial sums ----
    valid = m & (pred > eps) & (gt > eps)
    vf = valid.astype(jnp.float32)
    # One log of the ratio instead of two logs (EUP has a single VLIW slot).
    log_diff = jnp.log(jnp.where(valid, pred, 1.0) / jnp.where(valid, gt, 1.0))
    acc_ref[2] = acc_ref[2] + jnp.sum(vf)
    acc_ref[3] = acc_ref[3] + jnp.sum(log_diff * vf)
    acc_ref[4] = acc_ref[4] + jnp.sum(log_diff * log_diff * vf)

    # ---- finalize on the last grid step ----
    @pl.when(i == n_blocks - 1)
    def _finalize():
        C = 0.2 * acc_ref[0]
        # Hoisted denominator: per-element divide -> per-element multiply.
        # Guarded against C == 0 (reference would NaN in that degenerate case).
        inv2c = 0.5 / jnp.maximum(C, 1e-30)
        csq = C * C
        d = diff_ref[...]
        # Masked-out entries were stashed as 0 and contribute 0 either way.
        berhu_sum = jnp.sum(jnp.where(d < C, d, (d * d + csq) * inv2c))
        n_mask = acc_ref[1]
        berhu = jnp.where(n_mask > 0.0, berhu_sum / jnp.maximum(n_mask, 1.0), 0.0)

        n_valid = acc_ref[2]
        safe_n = jnp.maximum(n_valid, 1.0)
        mean_ld = acc_ref[3] / safe_n
        si = acc_ref[4] / safe_n - 0.5 * mean_ld * mean_ld
        si = jnp.where(n_valid > 0.0, si, 0.0)

        out_ref[0, 0] = berhu_scaling * berhu + si_scaling * si


def depth_supervision_loss(pred, gt, mask, config, eps=1e-6):
    """JAX/Pallas equivalent of DepthSupervision(config).forward(pred, gt, mask)."""
    berhu_scaling = float(config["berhu_scaling"])
    si_scaling = float(config["si_scaling"])

    n = int(pred.size)
    n_rows = -(-n // _LANE)
    n_rows = -(-n_rows // _ROW_ALIGN) * _ROW_ALIGN
    padded = n_rows * _LANE
    block_rows = min(_MAX_BLOCK_ROWS, n_rows)
    n_blocks = -(-n_rows // block_rows)

    def _flat(x, dtype):
        x = x.reshape(-1).astype(dtype)
        if padded != n:
            # Minimal tail pad only (mask pads with 0 -> excluded). Typical
            # depth-map sizes are already aligned and skip this copy entirely.
            x = jnp.pad(x, (0, padded - n))
        return x.reshape(n_rows, _LANE)

    p2 = _flat(pred, jnp.float32)
    g2 = _flat(gt, jnp.float32)
    m2 = _flat(jnp.asarray(mask) != 0, jnp.int8)   # int8 mask: 1 B/px

    kernel = functools.partial(
        _depth_loss_kernel,
        n_rows=n_rows, block_rows=block_rows, n_blocks=n_blocks,
        berhu_scaling=berhu_scaling, si_scaling=si_scaling, eps=eps)

    stash_rows = n_blocks * block_rows
    stash_bytes = stash_rows * _LANE * 4
    block_bytes = block_rows * _LANE * (4 + 4 + 1) * 2   # double-buffered pred+gt+mask
    vmem_limit = int(max(32 << 20, stash_bytes + 4 * block_bytes + (2 << 20)))
    # TODO(synk): for very large depth maps (diff stash beyond ~40 MiB, i.e. the
    # v7x 64 MiB VMEM budget), switch to a 2-pass grid=(2, n_blocks) that
    # recomputes |diff| in pass 2 instead of stashing it.

    out = pl.pallas_call(
        kernel,
        out_shape=jax.ShapeDtypeStruct((1, 1), jnp.float32),
        grid=(n_blocks,),
        in_specs=[
            pl.BlockSpec((block_rows, _LANE), lambda i: (i, 0)),
            pl.BlockSpec((block_rows, _LANE), lambda i: (i, 0)),
            pl.BlockSpec((block_rows, _LANE), lambda i: (i, 0)),
        ],
        out_specs=pl.BlockSpec(memory_space=pltpu.MemorySpace.SMEM),
        scratch_shapes=[
            pltpu.SMEM((8,), jnp.float32),                    # scalar accumulators
            pltpu.VMEM((stash_rows, _LANE), jnp.float32),     # masked |diff| stash
        ],
        compiler_params=pltpu.CompilerParams(
            dimension_semantics=("arbitrary",),
            vmem_limit_bytes=vmem_limit),
    )(p2, g2, m2)
    return out[0, 0]


def _reference_loss(pred, gt, mask, config, eps=1e-6):
    """Pure-jnp reference mirroring the PyTorch semantics (masked reductions)."""
    m = jnp.asarray(mask) != 0
    pred = pred.astype(jnp.float32)
    gt = gt.astype(jnp.float32)

    diff = jnp.abs(pred - gt)
    C = 0.2 * jnp.max(jnp.where(m, diff, 0.0))
    elem = jnp.where(diff < C, diff, (diff * diff + C * C) / (2.0 * C))
    berhu = jnp.sum(jnp.where(m, elem, 0.0)) / jnp.sum(m)

    valid = m & (pred > eps) & (gt > eps)
    ld = jnp.log(jnp.where(valid, pred, 1.0)) - jnp.log(jnp.where(valid, gt, 1.0))
    nv = jnp.sum(valid.astype(jnp.float32))
    sn = jnp.maximum(nv, 1.0)
    si = jnp.sum(jnp.where(valid, ld * ld, 0.0)) / sn \
        - 0.5 * (jnp.sum(jnp.where(valid, ld, 0.0)) / sn) ** 2
    si = jnp.where(nv > 0.0, si, 0.0)
    return config["berhu_scaling"] * berhu + config["si_scaling"] * si


if __name__ == "__main__":
    key = jax.random.PRNGKey(0)
    k1, k2, k3 = jax.random.split(key, 3)

    B, C, H, W = 2, 1, 16, 16
    pred = jax.random.uniform(k1, (B, C, H, W), jnp.float32, 0.1, 10.0)
    gt = jax.random.uniform(k2, (B, C, H, W), jnp.float32, 0.1, 10.0)
    mask = jax.random.uniform(k3, (B, C, H, W), jnp.float32) > 0.3

    # DepthSupervision.__init__ takes only a config dict (no learned params).
    config = {"berhu_scaling": 1.0, "si_scaling": 0.5}

    loss = depth_supervision_loss(pred, gt, mask, config)
    jax.block_until_ready(loss)

    ref = _reference_loss(pred, gt, mask, config)
    assert jnp.allclose(loss, ref, rtol=1e-4, atol=1e-5), (loss, ref)

    print("KERNEL_OK")
</pallas_src>

<mosaic_0001>
module attributes {stable_mosaic.version = 11 : i64} {
  func.func @_depth_loss_kernel(%arg0: i32, %arg1: memref<32x128xf32, #tpu.memory_space<vmem>>, %arg2: memref<32x128xf32, #tpu.memory_space<vmem>>, %arg3: memref<32x128xi8, #tpu.memory_space<vmem>>, %arg4: memref<1x1xf32, #tpu.memory_space<smem>>, %arg5: memref<8xf32, #tpu.memory_space<smem>>, %arg6: memref<32x128xf32, #tpu.memory_space<vmem>>) attributes {dimension_semantics = [#tpu.dimension_semantics<arbitrary>], iteration_bounds = array<i64: 1>, scalar_prefetch = 0 : i64, scratch_operands = 2 : i64, tpu.core_type = #tpu.core_type<tc>, window_params = [{transform_indices = @transform_0, window_bounds = array<i64: 32, 128>}, {transform_indices = @transform_1, window_bounds = array<i64: 32, 128>}, {transform_indices = @transform_2, window_bounds = array<i64: 32, 128>}, {transform_indices = @transform_3, window_bounds = array<i64: 1, 1>}]} {
    %c0_i32 = arith.constant 0 : i32
    %0 = arith.cmpi eq, %arg0, %c0_i32 : i32
    %1 = arith.extui %0 : i1 to i32
    %c0_i32_0 = arith.constant 0 : i32
    %2 = arith.cmpi ne, %1, %c0_i32_0 : i32
    scf.if %2 {
      %cst_26 = arith.constant 0.000000e+00 : f32
      %c0_27 = arith.constant 0 : index
      %80 = memref.load %arg5[%c0_27] : memref<8xf32, #tpu.memory_space<smem>>
      memref.store %cst_26, %arg5[%c0_27] : memref<8xf32, #tpu.memory_space<smem>>
      %cst_28 = arith.constant 0.000000e+00 : f32
      %c1_29 = arith.constant 1 : index
      %81 = memref.load %arg5[%c1_29] : memref<8xf32, #tpu.memory_space<smem>>
      memref.store %cst_28, %arg5[%c1_29] : memref<8xf32, #tpu.memory_space<smem>>
      %cst_30 = arith.constant 0.000000e+00 : f32
      %c2_31 = arith.constant 2 : index
      %82 = memref.load %arg5[%c2_31] : memref<8xf32, #tpu.memory_space<smem>>
      memref.store %cst_30, %arg5[%c2_31] : memref<8xf32, #tpu.memory_space<smem>>
      %cst_32 = arith.constant 0.000000e+00 : f32
      %c3_33 = arith.constant 3 : index
      %83 = memref.load %arg5[%c3_33] : memref<8xf32, #tpu.memory_space<smem>>
      memref.store %cst_32, %arg5[%c3_33] : memref<8xf32, #tpu.memory_space<smem>>
      %cst_34 = arith.constant 0.000000e+00 : f32
      %c4_35 = arith.constant 4 : index
      %84 = memref.load %arg5[%c4_35] : memref<8xf32, #tpu.memory_space<smem>>
      memref.store %cst_34, %arg5[%c4_35] : memref<8xf32, #tpu.memory_space<smem>>
    } else {
    }
    %c0 = arith.constant 0 : index
    %c0_1 = arith.constant 0 : index
    %3 = vector.load %arg1[%c0, %c0_1] : memref<32x128xf32, #tpu.memory_space<vmem>>, vector<32x128xf32>
    %c0_2 = arith.constant 0 : index
    %c0_3 = arith.constant 0 : index
    %4 = vector.load %arg2[%c0_2, %c0_3] : memref<32x128xf32, #tpu.memory_space<vmem>>, vector<32x128xf32>
    %5 = tpu.iota {dimensions = array<i32: 0>} : vector<32x128xi32>
    %c32_i32 = arith.constant 32 : i32
    %6 = arith.muli %arg0, %c32_i32 : i32
    %7 = vector.broadcast %6 : i32 to vector<32x128xi32>
    %8 = arith.addi %7, %5 : vector<32x128xi32>
    %c32_i32_4 = arith.constant 32 : i32
    %9 = vector.broadcast %c32_i32_4 : i32 to vector<32x128xi32>
    %10 = arith.cmpi slt, %8, %9 : vector<32x128xi32>
    %c0_5 = arith.constant 0 : index
    %c0_6 = arith.constant 0 : index
    %11 = vector.load %arg3[%c0_5, %c0_6] : memref<32x128xi8, #tpu.memory_space<vmem>>, vector<32x128xi8>
    %c0_i8 = arith.constant 0 : i8
    %12 = vector.broadcast %c0_i8 : i8 to vector<32x128xi8>
    %13 = arith.cmpi ne, %11, %12 : vector<32x128xi8>
    %14 = arith.andi %13, %10 : vector<32x128xi1>
    %15 = arith.subf %3, %4 : vector<32x128xf32>
    %16 = math.absf %15 : vector<32x128xf32>
    %cst = arith.constant 0.000000e+00 : f32
    %17 = vector.broadcast %cst : f32 to vector<32x128xf32>
    %18 = arith.select %14, %16, %17 : vector<32x128xi1>, vector<32x128xf32>
    %c32_i32_7 = arith.constant 32 : i32
    %19 = arith.muli %arg0, %c32_i32_7 : i32
    %20 = tpu.assume_multiple %19, 32 : i32
    %21 = arith.index_cast %20 : i32 to index
    %c0_8 = arith.constant 0 : index
    %22 = vector.load %arg6[%21, %c0_8] : memref<32x128xf32, #tpu.memory_space<vmem>>, vector<32x128xf32>
    tpu.vector_store %arg6[%21, %c0_8], %18 {strides = array<i32>} : memref<32x128xf32, #tpu.memory_space<vmem>>, vector<32x128xf32>,
    %c0_9 = arith.constant 0 : index
    %23 = memref.load %arg5[%c0_9] : memref<8xf32, #tpu.memory_space<smem>>
    %24 = vector.shape_cast %18 : vector<32x128xf32> to vector<1x32x128xf32>
    %cst_10 = arith.constant dense<0xFF800000> : vector<1xf32>
    %25 = vector.multi_reduction <maximumf>, %24, %cst_10 [1, 2] : vector<1x32x128xf32> to vector<1xf32>
    %26 = vector.shape_cast %25 : vector<1xf32> to vector<1x1x1xf32>
    %27 = vector.extract %26[0, 0, 0] : f32 from vector<1x1x1xf32>
    %28 = arith.maximumf %23, %27 : f32
    %c0_11 = arith.constant 0 : index
    %29 = memref.load %arg5[%c0_11] : memref<8xf32, #tpu.memory_space<smem>>
    memref.store %28, %arg5[%c0_11] : memref<8xf32, #tpu.memory_space<smem>>
    %c1 = arith.constant 1 : index
    %30 = memref.load %arg5[%c1] : memref<8xf32, #tpu.memory_space<smem>>
    %31 = arith.extui %14 : vector<32x128xi1> to vector<32x128xi32>
    %32 = arith.sitofp %31 : vector<32x128xi32> to vector<32x128xf32>
    %33 = vector.shape_cast %32 : vector<32x128xf32> to vector<1x32x128xf32>
    %cst_12 = arith.constant dense<0.000000e+00> : vector<1xf32>
    %34 = vector.multi_reduction <add>, %33, %cst_12 [1, 2] : vector<1x32x128xf32> to vector<1xf32>
    %35 = vector.shape_cast %34 : vector<1xf32> to vector<1x1x1xf32>
    %36 = vector.extract %35[0, 0, 0] : f32 from vector<1x1x1xf32>
    %37 = arith.addf %30, %36 : f32
    %c1_13 = arith.constant 1 : index
    %38 = memref.load %arg5[%c1_13] : memref<8xf32, #tpu.memory_space<smem>>
    memref.store %37, %arg5[%c1_13] : memref<8xf32, #tpu.memory_space<smem>>
    %cst_14 = arith.constant 9.99999997E-7 : f32
    %39 = vector.broadcast %cst_14 : f32 to vector<32x128xf32>
    %40 = arith.cmpf ogt, %3, %39 : vector<32x128xf32>
    %41 = arith.andi %14, %40 : vector<32x128xi1>
    %cst_15 = arith.constant 9.99999997E-7 : f32
    %42 = vector.broadcast %cst_15 : f32 to vector<32x128xf32>
    %43 = arith.cmpf ogt, %4, %42 : vector<32x128xf32>
    %44 = arith.andi %41, %43 : vector<32x128xi1>
    %45 = arith.extui %44 : vector<32x128xi1> to vector<32x128xi32>
    %46 = arith.sitofp %45 : vector<32x128xi32> to vector<32x128xf32>
    %cst_16 = arith.constant 1.000000e+00 : f32
    %47 = vector.broadcast %cst_16 : f32 to vector<32x128xf32>
    %48 = arith.select %44, %3, %47 : vector<32x128xi1>, vector<32x128xf32>
    %cst_17 = arith.constant 1.000000e+00 : f32
    %49 = vector.broadcast %cst_17 : f32 to vector<32x128xf32>
    %50 = arith.select %44, %4, %49 : vector<32x128xi1>, vector<32x128xf32>
    %51 = arith.divf %48, %50 : vector<32x128xf32>
    %52 = math.log %51 : vector<32x128xf32>
    %c2 = arith.constant 2 : index
    %53 = memref.load %arg5[%c2] : memref<8xf32, #tpu.memory_space<smem>>
    %54 = vector.shape_cast %46 : vector<32x128xf32> to vector<1x32x128xf32>
    %cst_18 = arith.constant dense<0.000000e+00> : vector<1xf32>
    %55 = vector.multi_reduction <add>, %54, %cst_18 [1, 2] : vector<1x32x128xf32> to vector<1xf32>
    %56 = vector.shape_cast %55 : vector<1xf32> to vector<1x1x1xf32>
    %57 = vector.extract %56[0, 0, 0] : f32 from vector<1x1x1xf32>
    %58 = arith.addf %53, %57 : f32
    %c2_19 = arith.constant 2 : index
    %59 = memref.load %arg5[%c2_19] : memref<8xf32, #tpu.memory_space<smem>>
    memref.store %58, %arg5[%c2_19] : memref<8xf32, #tpu.memory_space<smem>>
    %c3 = arith.constant 3 : index
    %60 = memref.load %arg5[%c3] : memref<8xf32, #tpu.memory_space<smem>>
    %61 = arith.mulf %52, %46 : vector<32x128xf32>
    %62 = vector.shape_cast %61 : vector<32x128xf32> to vector<1x32x128xf32>
    %cst_20 = arith.constant dense<0.000000e+00> : vector<1xf32>
    %63 = vector.multi_reduction <add>, %62, %cst_20 [1, 2] : vector<1x32x128xf32> to vector<1xf32>
    %64 = vector.shape_cast %63 : vector<1xf32> to vector<1x1x1xf32>
    %65 = vector.extract %64[0, 0, 0] : f32 from vector<1x1x1xf32>
    %66 = arith.addf %60, %65 : f32
    %c3_21 = arith.constant 3 : index
    %67 = memref.load %arg5[%c3_21] : memref<8xf32, #tpu.memory_space<smem>>
    memref.store %66, %arg5[%c3_21] : memref<8xf32, #tpu.memory_space<smem>>
    %c4 = arith.constant 4 : index
    %68 = memref.load %arg5[%c4] : memref<8xf32, #tpu.memory_space<smem>>
    %69 = arith.mulf %52, %52 : vector<32x128xf32>
    %70 = arith.mulf %69, %46 : vector<32x128xf32>
    %71 = vector.shape_cast %70 : vector<32x128xf32> to vector<1x32x128xf32>
    %cst_22 = arith.constant dense<0.000000e+00> : vector<1xf32>
    %72 = vector.multi_reduction <add>, %71, %cst_22 [1, 2] : vector<1x32x128xf32> to vector<1xf32>
    %73 = vector.shape_cast %72 : vector<1xf32> to vector<1x1x1xf32>
    %74 = vector.extract %73[0, 0, 0] : f32 from vector<1x1x1xf32>
    %75 = arith.addf %68, %74 : f32
    %c4_23 = arith.constant 4 : index
    %76 = memref.load %arg5[%c4_23] : memref<8xf32, #tpu.memory_space<smem>>
    memref.store %75, %arg5[%c4_23] : memref<8xf32, #tpu.memory_space<smem>>
    %c0_i32_24 = arith.constant 0 : i32
    %77 = arith.cmpi eq, %arg0, %c0_i32_24 : i32
    %78 = arith.extui %77 : i1 to i32
    %c0_i32_25 = arith.constant 0 : i32
    %79 = arith.cmpi ne, %78, %c0_i32_25 : i32
    scf.if %79 {
      %c0_26 = arith.constant 0 : index
      %80 = memref.load %arg5[%c0_26] : memref<8xf32, #tpu.memory_space<smem>>
      %cst_27 = arith.constant 2.000000e-01 : f32
      %81 = arith.mulf %cst_27, %80 : f32
      %cst_28 = arith.constant 1.000000e-30 : f32
      %82 = arith.maximumf %81, %cst_28 : f32
      %cst_29 = arith.constant 5.000000e-01 : f32
      %83 = arith.divf %cst_29, %82 : f32
      %84 = arith.mulf %81, %81 : f32
      %c0_30 = arith.constant 0 : index
      %c0_31 = arith.constant 0 : index
      %85 = vector.load %arg6[%c0_30, %c0_31] : memref<32x128xf32, #tpu.memory_space<vmem>>, vector<32x128xf32>
      %86 = vector.broadcast %81 : f32 to vector<32x128xf32>
      %87 = arith.cmpf olt, %85, %86 : vector<32x128xf32>
      %88 = arith.mulf %85, %85 : vector<32x128xf32>
      %89 = vector.broadcast %84 : f32 to vector<32x128xf32>
      %90 = arith.addf %88, %89 : vector<32x128xf32>
      %91 = vector.broadcast %83 : f32 to vector<32x128xf32>
      %92 = arith.mulf %90, %91 : vector<32x128xf32>
      %93 = arith.select %87, %85, %92 : vector<32x128xi1>, vector<32x128xf32>
      %94 = vector.shape_cast %93 : vector<32x128xf32> to vector<1x32x128xf32>
      %cst_32 = arith.constant dense<0.000000e+00> : vector<1xf32>
      %95 = vector.multi_reduction <add>, %94, %cst_32 [1, 2] : vector<1x32x128xf32> to vector<1xf32>
      %96 = vector.shape_cast %95 : vector<1xf32> to vector<1x1x1xf32>
      %97 = vector.extract %96[0, 0, 0] : f32 from vector<1x1x1xf32>
      %c1_33 = arith.constant 1 : index
      %98 = memref.load %arg5[%c1_33] : memref<8xf32, #tpu.memory_space<smem>>
      %cst_34 = arith.constant 0.000000e+00 : f32
      %99 = arith.cmpf ogt, %98, %cst_34 : f32
      %cst_35 = arith.constant 1.000000e+00 : f32
      %100 = arith.maximumf %98, %cst_35 : f32
      %101 = arith.divf %97, %100 : f32
      %cst_36 = arith.constant 0.000000e+00 : f32
      %102 = arith.select %99, %101, %cst_36 : f32
      %c2_37 = arith.constant 2 : index
      %103 = memref.load %arg5[%c2_37] : memref<8xf32, #tpu.memory_space<smem>>
      %cst_38 = arith.constant 1.000000e+00 : f32
      %104 = arith.maximumf %103, %cst_38 : f32
      %c3_39 = arith.constant 3 : index
      %105 = memref.load %arg5[%c3_39] : memref<8xf32, #tpu.memory_space<smem>>
      %106 = arith.divf %105, %104 : f32
      %c4_40 = arith.constant 4 : index
      %107 = memref.load %arg5[%c4_40] : memref<8xf32, #tpu.memory_space<smem>>
      %108 = arith.divf %107, %104 : f32
      %cst_41 = arith.constant 5.000000e-01 : f32
      %109 = arith.mulf %cst_41, %106 : f32
      %110 = arith.mulf %109, %106 : f32
      %111 = arith.subf %108, %110 : f32
      %cst_42 = arith.constant 0.000000e+00 : f32
      %112 = arith.cmpf ogt, %103, %cst_42 : f32
      %cst_43 = arith.constant 0.000000e+00 : f32
      %113 = arith.select %112, %111, %cst_43 : f32
      %cst_44 = arith.constant 1.000000e+00 : f32
      %114 = arith.mulf %cst_44, %102 : f32
      %cst_45 = arith.constant 5.000000e-01 : f32
      %115 = arith.mulf %cst_45, %113 : f32
      %116 = arith.addf %114, %115 : f32
      %c0_46 = arith.constant 0 : index
      %c0_47 = arith.constant 0 : index
      %117 = memref.load %arg4[%c0_46, %c0_47] : memref<1x1xf32, #tpu.memory_space<smem>>
      memref.store %116, %arg4[%c0_46, %c0_47] : memref<1x1xf32, #tpu.memory_space<smem>>
    } else {
    }
    return
  }
  func.func @transform_0(%arg0: i32) -> (i32, i32) {
    %c0_i32 = arith.constant 0 : i32
    %c0_i32_0 = arith.constant 0 : i32
    return %arg0, %c0_i32 : i32, i32
  }
  func.func @transform_1(%arg0: i32) -> (i32, i32) {
    %c0_i32 = arith.constant 0 : i32
    %c0_i32_0 = arith.constant 0 : i32
    return %arg0, %c0_i32 : i32, i32
  }
  func.func @transform_2(%arg0: i32) -> (i32, i32) {
    %c0_i32 = arith.constant 0 : i32
    %c0_i32_0 = arith.constant 0 : i32
    return %arg0, %c0_i32 : i32, i32
  }
  func.func @transform_3(%arg0: i32) -> (i32, i32) {
    %c0_i32 = arith.constant 0 : i32
    %c0_i32_0 = arith.constant 0 : i32
    %c0_i32_1 = arith.constant 0 : i32
    return %c0_i32, %c0_i32_0 : i32, i32
  }
}

</mosaic_0001>

<llo_original>
// kernel: tpu_custom_call.1
$region0: #{tpu_custom_call.1}
  #allocation0 [shape = 'u32[]', space=smem, size = 0x4, offset = 0x4, fixed_abs, tag = 'smem constant byte address 0x4 - core index']
  #allocation1 [shape = 'u32[144,128]{1,0:T(1,128)}', space=vmem, size = 0x12000, scoped, tag = 'internal scratch']
  #allocation2 [shape = 'f32[8]{0:T(128)}', space=smem, size = 0x200, scoped, tag = 'scratch operand']
  #allocation3 [shape = 'f32[32,128]{1,0:T(8,128)}', space=vmem, size = 0x4000, scoped, tag = 'scratch operand']
  %s0 = inlined_call_operand.hbm [shape: f32[32,128], index: 0, kind: input, shape index: {}]
  %s1 = inlined_call_operand.hbm [shape: f32[32,128], index: 1, kind: input, shape index: {}]
  %s2 = inlined_call_operand.hbm [shape: s8[32,128], index: 2, kind: input, shape index: {}]
  %s3 = inlined_call_operand.hbm [shape: f32[1,1], index: 3, kind: output, shape index: {}]
  %s4 = sld [smem:[#allocation0]]
  $region42: #{tpu_custom_call.1} parent=0
    _
  %s6 = ssub.s32 1, %s4
  %s7 = scalar_select 0, %s6, %s4
  $region1: #{tpu_custom_call.1} parent=0
    #allocation4 [shape = 'u8[16384]{0}', space=vmem, size = 0x4000, scoped, tag = 'input window, operand 0, single buffered']
    #allocation5 [shape = 's32[1]{0}', space=sflag, size = 0x4, scoped, tag = 'scoped memory for tpu_custom_call.1']
    #allocation6 [shape = 's32[1]{0}', space=sflag, size = 0x4, scoped, tag = 'scoped memory for tpu_custom_call.1']
    #allocation7 [shape = 'u8[16384]{0}', space=vmem, size = 0x4000, scoped, tag = 'input window, operand 1, single buffered']
    #allocation8 [shape = 's32[1]{0}', space=sflag, size = 0x4, scoped, tag = 'scoped memory for tpu_custom_call.1']
    #allocation9 [shape = 'u8[4096]{0}', space=vmem, size = 0x1000, scoped, tag = 'input window, operand 2, single buffered']
    #allocation10 [shape = 'u8[512]{0}', space=smem, size = 0x200, scoped, tag = 'output window, operand 0, single buffered']
    %8 = vsyncpa [#allocation5], 0
    %9 = vsyncpa [#allocation8], 0
    %10 = vsyncpa [#allocation6], 0
    // Predicated region
    $region2: #{tpu_custom_call.1} parent=1 // pred_check
      _
    $region3: #{tpu_custom_call.1} parent=1 // pred_check_branch
      %12 = sbr.rel (0) target = $region5
    $region4: #{tpu_custom_call.1} parent=1 // pred_region
      %s14 = ssub.s32 512, 512
      %15 = vsyncadd [#allocation5], %s14
      %s16 = sshll.u32 [#allocation4], 4
      %s17 = int_to_ptr.vmem [resolvable:$true] %s16
      %22 = dma.hbm_to_vmem [thread:$0]  %s0, 512, %s17, [#allocation5], 128, 128, 8
    $region5: #{tpu_custom_call.1} parent=1 // pred_fallthru
      _
    // Predicated region
    $region6: #{tpu_custom_call.1} parent=1 // pred_check
      _
    $region7: #{tpu_custom_call.1} parent=1 // pred_check_branch
      %24 = sbr.rel (0) target = $region9
    $region8: #{tpu_custom_call.1} parent=1 // pred_region
      %s26 = ssub.s32 512, 512
      %27 = vsyncadd [#allocation8], %s26
      %s28 = sshll.u32 [#allocation7], 4
      %s29 = int_to_ptr.vmem [resolvable:$true] %s28
      %34 = dma.hbm_to_vmem [thread:$0]  %s1, 512, %s29, [#allocation8], 128, 128, 8
    $region9: #{tpu_custom_call.1} parent=1 // pred_fallthru
      _
    // Predicated region
    $region10: #{tpu_custom_call.1} parent=1 // pred_check
      _
    $region11: #{tpu_custom_call.1} parent=1 // pred_check_branch
      %36 = sbr.rel (0) target = $region13
    $region12: #{tpu_custom_call.1} parent=1 // pred_region
      %s38 = ssub.s32 128, 128
      %39 = vsyncadd [#allocation8], %s38
      %s41 = sshll.u32 [#allocation9], 4
      %s42 = int_to_ptr.vmem [resolvable:$true] %s41
      %44 = dma.hbm_to_vmem [thread:$0]  %s2, 128, %s42, [#allocation8]
    $region13: #{tpu_custom_call.1} parent=1 // pred_fallthru
      _
    // Predicated region
    $region14: #{tpu_custom_call.1} parent=1 // pred_check
      _
    $region15: #{tpu_custom_call.1} parent=1 // pred_check_branch
      %46 = sbr.rel (0) target = $region17
    $region16: #{tpu_custom_call.1} parent=1 // pred_region
      %47 = dma.done [#allocation5], 512
    $region17: #{tpu_custom_call.1} parent=1 // pred_fallthru
      _
    // Predicated region
    $region18: #{tpu_custom_call.1} parent=1 // pred_check
      _
    $region19: #{tpu_custom_call.1} parent=1 // pred_check_branch
      %49 = sbr.rel (0) target = $region21
    $region20: #{tpu_custom_call.1} parent=1 // pred_region
      %50 = dma.done [#allocation8], 512
    $region21: #{tpu_custom_call.1} parent=1 // pred_fallthru
      _
    // Predicated region
    $region22: #{tpu_custom_call.1} parent=1 // pred_check
      _
    $region23: #{tpu_custom_call.1} parent=1 // pred_check_branch
      %52 = sbr.rel (0) target = $region25
    $region24: #{tpu_custom_call.1} parent=1 // pred_region
      %53 = dma.done [#allocation8], 128
    $region25: #{tpu_custom_call.1} parent=1 // pred_fallthru
      _
    %p56 = scmp.eq.s32.totalorder 0, 0
    // Predicated region
    $region26: #{tpu_custom_call.1} parent=1 // pred_check
      %p57 = pneg %p56
    $region27: #{tpu_custom_call.1} parent=1 // pred_check_branch
      %59 = sbr.rel (%p57) target = $region29
    $region28: #{tpu_custom_call.1} parent=1 // pred_region
      %s60 = scalar_lea.smem [#allocation2], 0
      %61 = sst [smem:[%s60]] 0.0
      %s62 = scalar_lea.smem [#allocation2], 1
      %63 = sst [smem:[%s62]] 0.0
      %s64 = scalar_lea.smem [#allocation2], 2
      %65 = sst [smem:[%s64]] 0.0
      %s66 = scalar_lea.smem [#allocation2], 3
      %67 = sst [smem:[%s66]] 0.0
      %s68 = scalar_lea.smem [#allocation2], 4
      %69 = sst [smem:[%s68]] 0.0
    $region29: #{tpu_custom_call.1} parent=1 // pred_fallthru
      _
    %v70 = vld [vmem:[#allocation4] sm:$0xff]
    %v71 = vld [vmem:[#allocation4 + $0x8] sm:$0xff]
    %v72 = vld [vmem:[#allocation4 + $0x10] sm:$0xff]
    %v73 = vld [vmem:[#allocation4 + $0x18] sm:$0xff]
    %v74 = vld [vmem:[#allocation7] sm:$0xff]
    %v75 = vld [vmem:[#allocation7 + $0x8] sm:$0xff]
    %v76 = vld [vmem:[#allocation7 + $0x10] sm:$0xff]
    %v77 = vld [vmem:[#allocation7 + $0x18] sm:$0xff]
    %v78 = vlaneseq
    %v79 = vshrl.u32 %v78, 7
    %v80 = vadd.s32 %v79, 8
    %v81 = vadd.s32 %v79, 16
    %v82 = vadd.s32 %v79, 24
    %s83 = smul.u32 0, 32
    %v84 = vstv %s83
    %v85 = vadd.s32 %v84, %v79
    %v86 = vadd.s32 %v84, %v80
    %v87 = vadd.s32 %v84, %v81
    %v88 = vadd.s32 %v84, %v82
    %vm89 = vcmp.lt.s32.totalorder %v85, 32
    %vm90 = vcmp.lt.s32.totalorder %v86, 32
    %vm91 = vcmp.lt.s32.totalorder %v87, 32
    %vm92 = vcmp.lt.s32.totalorder %v88, 32
    %v93 = vld [vmem:[#allocation9] sm:$0xff]
    %vm94 = vnez %v93
    %vm95 = vmpackc.low %vm89, %vm89
    %vm96 = vmpackc.even %vm95, %vm95
    %vm97 = vmpackc.low %vm90, %vm90
    %vm98 = vmpackc.even %vm97, %vm97
    %vm99 = vmpackc.low %vm91, %vm91
    %vm100 = vmpackc.even %vm99, %vm99
    %vm101 = vmpackc.low %vm92, %vm92
    %vm102 = vmpackc.even %vm101, %vm101
    %v103 = vsel %vm96, 16843009, 0
    %v104 = vsel %vm98, 16843009, 0
    %v105 = vsel %vm100, 16843009, 0
    %v106 = vsel %vm102, 16843009, 0
    %v107 = vunpack.c.0.s8 %v103
    %v108 = vunpack.c.0.s8 %v104
    %v109 = vunpack.c.0.s8 %v105
    %v110 = vunpack.c.0.s8 %v106
    %v111 = vpack.c.b16 %v108, %v107
    %v112 = vpack.c.b16 %v110, %v109
    %v113 = vpack.c.b8 %v112, %v111
    %vm114 = vnez %v113
    %vm115 = vmand %vm94, %vm114
    %v116 = vsub.f32 %v70, %v74
    %v117 = vsub.f32 %v71, %v75
    %v118 = vsub.f32 %v72, %v76
    %v119 = vsub.f32 %v73, %v77
    %v120 = vand.u32 2147483647, %v116
    %v121 = vand.u32 2147483647, %v117
    %v122 = vand.u32 2147483647, %v118
    %v123 = vand.u32 2147483647, %v119
    %v124 = vsel %vm115, 16843009, 0
    %v125 = vunpack.c.0.s8 %v124
    %v126 = vunpack.c.1.s8 %v124
    %v127 = vunpack.c.2.s8 %v124
    %v128 = vunpack.c.3.s8 %v124
    %v129 = vpack.c.b16 %v125, %v125
    %v130 = vpack.c.b8 %v129, %v129
    %v131 = vpack.c.b16 %v126, %v126
    %v132 = vpack.c.b8 %v131, %v131
    %v133 = vpack.c.b16 %v127, %v127
    %v134 = vpack.c.b8 %v133, %v133
    %v135 = vpack.c.b16 %v128, %v128
    %v136 = vpack.c.b8 %v135, %v135
    %vm137 = vnez %v130
    %vm138 = vnez %v132
    %vm139 = vnez %v134
    %vm140 = vnez %v136
    %v141 = vsel %vm137, 16843009, 0
    %v142 = vsel %vm138, 16843009, 0
    %v143 = vsel %vm139, 16843009, 0
    %v144 = vsel %vm140, 16843009, 0
    %v145 = vunpack.c.0.s8 %v141
    %v146 = vunpack.c.0.s8 %v142
    %v147 = vunpack.c.0.s8 %v143
    %v148 = vunpack.c.0.s8 %v144
    %vm149 = vcmp.ne.s32.totalorder %v145, 0
    %vm150 = vcmp.ne.s32.totalorder %v146, 0
    %vm151 = vcmp.ne.s32.totalorder %v147, 0
    %vm152 = vcmp.ne.s32.totalorder %v148, 0
    %v153 = vsel %vm149, %v120, 0.0
    %v154 = vsel %vm150, %v121, 0.0
    %v155 = vsel %vm151, %v122, 0.0
    %v156 = vsel %vm152, %v123, 0.0
    %s157 = scalar_lea.vmem [#allocation3], %s83
    %158 = vst [vmem:[%s157] sm:$0xff] %v153
    %159 = vst [vmem:[%s157 + $0x8] sm:$0xff] %v154
    %160 = vst [vmem:[%s157 + $0x10] sm:$0xff] %v155
    %161 = vst [vmem:[%s157 + $0x18] sm:$0xff] %v156
    %s162 = sld [smem:[#allocation2]]
    %v163 = vmax.f32 %v153, %v154
    %v164 = vmax.f32 %v155, %v156
    %v165 = vmax.f32 %v163, %v164
    %166 = vmax.xlane.f32.xlu0 %v165
    %v167 = vpop.xlane.xlu0 %166
    %v168 = vrot.slane %v167, 4
    %v169 = vmax.f32 %v167, %v168
    %v170 = vrot.slane %v169, 2
    %v171 = vmax.f32 %v169, %v170
    %v172 = vrot.slane %v171, 1
    %v173 = vmax.f32 %v171, %v172
    %s174 = vtos %v173
    %s175 = smax.f32 %s162, %s174
    %s176 = scalar_lea.smem [#allocation2], 0
    %177 = sst [smem:[%s176]] %s175
    %s178 = sld [smem:[#allocation2 + $0x1]]
    %v179 = vsel %vm149, 1, 0
    %v180 = vsel %vm150, 1, 0
    %v181 = vsel %vm151, 1, 0
    %v182 = vsel %vm152, 1, 0
    %v183 = vcvt.s32.f32 %v179
    %v184 = vcvt.s32.f32 %v180
    %v185 = vcvt.s32.f32 %v181
    %v186 = vcvt.s32.f32 %v182
    %v187 = vadd.f32 %v183, %v184
    %v188 = vadd.f32 %v187, %v185
    %v189 = vadd.f32 %v188, %v186
    %190 = vadd.xlane.f32.xlu0 %v189
    %v191 = vpop.xlane.xlu0 %190
    %v192 = vrot.slane %v191, 4
    %v193 = vadd.f32 %v191, %v192
    %v194 = vrot.slane %v193, 2
    %v195 = vadd.f32 %v193, %v194
    %v196 = vrot.slane %v195, 1
    %v197 = vadd.f32 %v195, %v196
    %s198 = vtos %v197
    %s199 = sadd.f32 %s178, %s198
    %s200 = scalar_lea.smem [#allocation2], 1
    %201 = sst [smem:[%s200]] %s199
    %vm202 = vcmp.gt.f32.partialorder %v70, 1e-06
    %vm203 = vcmp.gt.f32.partialorder %v71, 1e-06
    %vm204 = vcmp.gt.f32.partialorder %v72, 1e-06
    %vm205 = vcmp.gt.f32.partialorder %v73, 1e-06
    %vm206 = vmpackc.low %vm203, %vm202
    %vm207 = vmpackc.low %vm205, %vm204
    %vm208 = vmpackc.even %vm207, %vm206
    %vm209 = vmand %vm115, %vm208
    %vm210 = vcmp.gt.f32.partialorder %v74, 1e-06
    %vm211 = vcmp.gt.f32.partialorder %v75, 1e-06
    %vm212 = vcmp.gt.f32.partialorder %v76, 1e-06
    %vm213 = vcmp.gt.f32.partialorder %v77, 1e-06
    %vm214 = vmpackc.low %vm211, %vm210
    %vm215 = vmpackc.low %vm213, %vm212
    %vm216 = vmpackc.even %vm215, %vm214
    %vm217 = vmand %vm209, %vm216
    %v218 = vsel %vm217, 16843009, 0
    %v219 = vunpack.c.0.s8 %v218
    %v220 = vunpack.c.1.s8 %v218
    %v221 = vunpack.c.2.s8 %v218
    %v222 = vunpack.c.3.s8 %v218
    %v223 = vpack.c.b16 %v219, %v219
    %v224 = vpack.c.b8 %v223, %v223
    %v225 = vpack.c.b16 %v220, %v220
    %v226 = vpack.c.b8 %v225, %v225
    %v227 = vpack.c.b16 %v221, %v221
    %v228 = vpack.c.b8 %v227, %v227
    %v229 = vpack.c.b16 %v222, %v222
    %v230 = vpack.c.b8 %v229, %v229
    %vm231 = vnez %v224
    %vm232 = vnez %v226
    %vm233 = vnez %v228
    %vm234 = vnez %v230
    %v235 = vsel %vm231, 16843009, 0
    %v236 = vsel %vm232, 16843009, 0
    %v237 = vsel %vm233, 16843009, 0
    %v238 = vsel %vm234, 16843009, 0
    %v239 = vunpack.c.0.s8 %v235
    %v240 = vunpack.c.0.s8 %v236
    %v241 = vunpack.c.0.s8 %v237
    %v242 = vunpack.c.0.s8 %v238
    %vm243 = vcmp.ne.s32.totalorder %v239, 0
    %vm244 = vcmp.ne.s32.totalorder %v240, 0
    %vm245 = vcmp.ne.s32.totalorder %v241, 0
    %vm246 = vcmp.ne.s32.totalorder %v242, 0
    %v247 = vsel %vm243, 1, 0
    %v248 = vsel %vm244, 1, 0
    %v249 = vsel %vm245, 1, 0
    %v250 = vsel %vm246, 1, 0
    %v251 = vcvt.s32.f32 %v247
    %v252 = vcvt.s32.f32 %v248
    %v253 = vcvt.s32.f32 %v249
    %v254 = vcvt.s32.f32 %v250
    %v255 = vsel %vm243, %v70, 1.0
    %v256 = vsel %vm244, %v71, 1.0
    %v257 = vsel %vm245, %v72, 1.0
    %v258 = vsel %vm246, %v73, 1.0
    %v259 = vsel %vm243, %v74, 1.0
    %v260 = vsel %vm244, %v75, 1.0
    %v261 = vsel %vm245, %v76, 1.0
    %v262 = vsel %vm246, %v77, 1.0
    %v263 = vrcp.pop %v259
    %v264 = vmul.f32 %v255, %v263
    %v265 = vrcp.pop %v260
    %v266 = vmul.f32 %v256, %v265
    %v267 = vrcp.pop %v261
    %v268 = vmul.f32 %v257, %v267
    %v269 = vrcp.pop %v262
    %v270 = vmul.f32 %v258, %v269
    %v271 = vlog2.pop %v264
    %v272 = vmul.f32 %v271, 0.6931472
    %v273 = vlog2.pop %v266
    %v274 = vmul.f32 %v273, 0.6931472
    %v275 = vlog2.pop %v268
    %v276 = vmul.f32 %v275, 0.6931472
    %v277 = vlog2.pop %v270
    %v278 = vmul.f32 %v277, 0.6931472
    %s279 = sld [smem:[#allocation2 + $0x2]]
    %v280 = vadd.f32 %v251, %v252
    %v281 = vadd.f32 %v280, %v253
    %v282 = vadd.f32 %v281, %v254
    %283 = vadd.xlane.f32.xlu0 %v282
    %v284 = vpop.xlane.xlu0 %283
    %v285 = vrot.slane %v284, 4
    %v286 = vadd.f32 %v284, %v285
    %v287 = vrot.slane %v286, 2
    %v288 = vadd.f32 %v286, %v287
    %v289 = vrot.slane %v288, 1
    %v290 = vadd.f32 %v288, %v289
    %s291 = vtos %v290
    %s292 = sadd.f32 %s279, %s291
    %s293 = scalar_lea.smem [#allocation2], 2
    %294 = sst [smem:[%s293]] %s292
    %s295 = sld [smem:[#allocation2 + $0x3]]
    %v296 = vmul.f32 %v272, %v251
    %v297 = vmul.f32 %v274, %v252
    %v298 = vmul.f32 %v276, %v253
    %v299 = vmul.f32 %v278, %v254
    %v300 = vadd.f32 %v296, %v297
    %v301 = vadd.f32 %v300, %v298
    %v302 = vadd.f32 %v301, %v299
    %303 = vadd.xlane.f32.xlu0 %v302
    %v304 = vpop.xlane.xlu0 %303
    %v305 = vrot.slane %v304, 4
    %v306 = vadd.f32 %v304, %v305
    %v307 = vrot.slane %v306, 2
    %v308 = vadd.f32 %v306, %v307
    %v309 = vrot.slane %v308, 1
    %v310 = vadd.f32 %v308, %v309
    %s311 = vtos %v310
    %s312 = sadd.f32 %s295, %s311
    %s313 = scalar_lea.smem [#allocation2], 3
    %314 = sst [smem:[%s313]] %s312
    %s315 = sld [smem:[#allocation2 + $0x4]]
    %v316 = vmul.f32 %v272, %v272
    %v317 = vmul.f32 %v274, %v274
    %v318 = vmul.f32 %v276, %v276
    %v319 = vmul.f32 %v278, %v278
    %v320 = vmul.f32 %v316, %v251
    %v321 = vmul.f32 %v317, %v252
    %v322 = vmul.f32 %v318, %v253
    %v323 = vmul.f32 %v319, %v254
    %v324 = vadd.f32 %v320, %v321
    %v325 = vadd.f32 %v324, %v322
    %v326 = vadd.f32 %v325, %v323
    %327 = vadd.xlane.f32.xlu0 %v326
    %v328 = vpop.xlane.xlu0 %327
    %v329 = vrot.slane %v328, 4
    %v330 = vadd.f32 %v328, %v329
    %v331 = vrot.slane %v330, 2
    %v332 = vadd.f32 %v330, %v331
    %v333 = vrot.slane %v332, 1
    %v334 = vadd.f32 %v332, %v333
    %s335 = vtos %v334
    %s336 = sadd.f32 %s315, %s335
    %s337 = scalar_lea.smem [#allocation2], 4
    %338 = sst [smem:[%s337]] %s336
    // Predicated region
    $region30: #{tpu_custom_call.1} parent=1 // pred_check
      %p339 = pneg %p56
    $region31: #{tpu_custom_call.1} parent=1 // pred_check_branch
      %341 = sbr.rel (%p339) target = $region33
    $region32: #{tpu_custom_call.1} parent=1 // pred_region
      %s342 = sld [smem:[#allocation2]]
      %s343 = smul.f32 %s342, 0.2
      %s344 = smax.f32 %s343, 1e-30
      %v345 = vstv %s344
      %v346 = vrcp.pop %v345
      %s347 = vtos %v346
      %s348 = smul.f32 0.5, %s347
      %s349 = smul.f32 %s343, %s343
      %v350 = vld [vmem:[#allocation3] sm:$0xff]
      %v351 = vld [vmem:[#allocation3 + $0x8] sm:$0xff]
      %v352 = vld [vmem:[#allocation3 + $0x10] sm:$0xff]
      %v353 = vld [vmem:[#allocation3 + $0x18] sm:$0xff]
      %v354 = vstv %s343
      %vm355 = vcmp.lt.f32.partialorder %v350, %v354
      %vm356 = vcmp.lt.f32.partialorder %v351, %v354
      %vm357 = vcmp.lt.f32.partialorder %v352, %v354
      %vm358 = vcmp.lt.f32.partialorder %v353, %v354
      %v359 = vmul.f32 %v350, %v350
      %v360 = vmul.f32 %v351, %v351
      %v361 = vmul.f32 %v352, %v352
      %v362 = vmul.f32 %v353, %v353
      %v363 = vstv %s349
      %v364 = vadd.f32 %v359, %v363
      %v365 = vadd.f32 %v360, %v363
      %v366 = vadd.f32 %v361, %v363
      %v367 = vadd.f32 %v362, %v363
      %v368 = vstv %s348
      %v369 = vmul.f32 %v364, %v368
      %v370 = vmul.f32 %v365, %v368
      %v371 = vmul.f32 %v366, %v368
      %v372 = vmul.f32 %v367, %v368
      %v373 = vsel %vm355, %v350, %v369
      %v374 = vsel %vm356, %v351, %v370
      %v375 = vsel %vm357, %v352, %v371
      %v376 = vsel %vm358, %v353, %v372
      %v377 = vadd.f32 %v373, %v374
      %v378 = vadd.f32 %v377, %v375
      %v379 = vadd.f32 %v378, %v376
      %380 = vadd.xlane.f32.xlu0 %v379
      %v381 = vpop.xlane.xlu0 %380
      %v382 = vrot.slane %v381, 4
      %v383 = vadd.f32 %v381, %v382
      %v384 = vrot.slane %v383, 2
      %v385 = vadd.f32 %v383, %v384
      %v386 = vrot.slane %v385, 1
      %v387 = vadd.f32 %v385, %v386
      %s388 = vtos %v387
      %s389 = sld [smem:[#allocation2 + $0x1]]
      %p390 = scmp.gt.f32.partialorder %s389, 0.0
      %s391 = smax.f32 %s389, 1.0
      %v392 = vstv %s391
      %v393 = vrcp.pop %v392
      %s394 = vtos %v393
      %s395 = smul.f32 %s388, %s394
      %s396 = scalar_select %p390, %s395, 0.0
      %s397 = sld [smem:[#allocation2 + $0x2]]
      %s398 = smax.f32 %s397, 1.0
      %s399 = sld [smem:[#allocation2 + $0x3]]
      %v400 = vstv %s398
      %v401 = vrcp.pop %v400
      %s402 = vtos %v401
      %s403 = smul.f32 %s399, %s402
      %s404 = sld [smem:[#allocation2 + $0x4]]
      %v405 = vstv %s398
      %v406 = vrcp.pop %v405
      %s407 = vtos %v406
      %s408 = smul.f32 %s404, %s407
      %s409 = smul.f32 %s403, 0.5
      %s410 = smul.f32 %s409, %s403
      %s411 = ssub.f32 %s408, %s410
      %p412 = scmp.gt.f32.partialorder %s397, 0.0
      %s413 = scalar_select %p412, %s411, 0.0
      %s414 = smul.f32 %s413, 0.5
      %s415 = sadd.f32 %s396, %s414
      %s416 = scalar_lea.smem [#allocation10], 0
      %417 = sst [smem:[%s416]] %s415
    $region33: #{tpu_custom_call.1} parent=1 // pred_fallthru
      _
    // Predicated region
    $region34: #{tpu_custom_call.1} parent=1 // pred_check
      _
    $region35: #{tpu_custom_call.1} parent=1 // pred_check_branch
      %419 = sbr.rel (0) target = $region37
    $region36: #{tpu_custom_call.1} parent=1 // pred_region
      %s421 = ssub.s32 16, 16
      %422 = vsyncadd [#allocation6], %s421
      %425 = dma.smem_to_hbm [#allocation10], 16, %s3, [#allocation6]
    $region37: #{tpu_custom_call.1} parent=1 // pred_fallthru
      _
    // Predicated region
    $region38: #{tpu_custom_call.1} parent=1 // pred_check
      _
    $region39: #{tpu_custom_call.1} parent=1 // pred_check_branch
      %427 = sbr.rel (0) target = $region41
    $region40: #{tpu_custom_call.1} parent=1 // pred_region
      %428 = dma.done [#allocation6], 16
    $region41: #{tpu_custom_call.1} parent=1 // pred_fallthru
      _
    %429 = sfence
    %430 = vsyncpa [#allocation5], 1
    %431 = vsyncpa [#allocation8], 1
    %432 = vsyncpa [#allocation6], 1

</llo_original>
